<compile_context>
chip_gen: v6e
topology: v6e:2x2x1
jax: 0.10.0
libtpu: 0.0.40
codegen_flags: <defaults>
</compile_context>

<pallas_src>
import functools
import math

import jax
import jax.numpy as jnp
from jax.experimental import pallas as pl
from jax.experimental.pallas import tpu as pltpu


def _round_up(n: int, m: int) -> int:
    return ((n + m - 1) // m) * m


def gru_gate_kernel(x_ref, y_ref, wcat_ref, ucat_ref, ug_ref, bg_ref, o_ref):
    """One (TM, D_pad) row-tile; weights/bias are resident across the M grid."""
    x = x_ref[...]                 # native dtype -> MXU operand (no f32 upcast)
    y = y_ref[...]
    d = x.shape[-1]                # padded D (multiple of 128)

    # Two fused matmuls: [TM,D]x[D,3D] and [TM,D]x[D,2D], f32 accumulation on MXU.
    yw = jnp.dot(y, wcat_ref[...], preferred_element_type=jnp.float32)   # [TM, 3D]
    xu = jnp.dot(x, ucat_ref[...], preferred_element_type=jnp.float32)   # [TM, 2D]

    x_f = x.astype(jnp.float32)
    bg = bg_ref[...].astype(jnp.float32)                                  # (1, D)

    r = jax.nn.sigmoid(yw[:, 0:d] + xu[:, 0:d])
    z = jax.nn.sigmoid(yw[:, d:2 * d] + xu[:, d:2 * d] - bg)
    rx = (r * x_f).astype(x.dtype)                                        # MXU operand
    h = jnp.tanh(yw[:, 2 * d:3 * d]
                 + jnp.dot(rx, ug_ref[...], preferred_element_type=jnp.float32))

    o_ref[...] = ((1.0 - z) * x_f + z * h).astype(o_ref.dtype)


def fuse_params(params):
    """Concatenate + lane-pad the six pre-transposed [D, D] weights for the kernel."""
    d = params["Wr"].shape[0]
    d_pad = max(128, _round_up(d, 128))

    def pad_w(w):
        return jnp.pad(w, ((0, d_pad - w.shape[0]), (0, d_pad - w.shape[1])))

    wcat = jnp.concatenate(
        [pad_w(params["Wr"]), pad_w(params["Wz"]), pad_w(params["Wg"])], axis=1)
    ucat = jnp.concatenate([pad_w(params["Ur"]), pad_w(params["Uz"])], axis=1)
    ug = pad_w(params["Ug"])
    bg = jnp.pad(params["bg"].reshape(1, -1), ((0, 0), (0, d_pad - d)))
    return {"Wcat": wcat, "Ucat": ucat, "Ug": ug, "bg": bg}


@functools.partial(jax.jit, static_argnames=("block_m",))
def gru_gate(x, y, fused, *, block_m=256):
    """x, y: [M, D]. fused: output of fuse_params (padded/fused weights)."""
    m, d = x.shape
    d_pad = fused["Ug"].shape[0]
    itemsize = jnp.dtype(x.dtype).itemsize

    # Row-tile size: cap so (resident weights + double-buffered x/y/out tiles) stays
    # well inside the tightest VMEM budget (v7x: 64 MiB per TensorCore).
    tm = min(block_m, _round_up(m, 8))
    weight_bytes = 2 * (6 * d_pad * d_pad + d_pad) * itemsize  # default double buffer
    budget = 40 * 1024 * 1024
    while tm > 8 and weight_bytes + 3 * 2 * tm * d_pad * itemsize > budget:
        tm //= 2
    tm = max(tm, 8)

    m_pad = _round_up(m, tm)
    xp = jnp.pad(x, ((0, m_pad - m), (0, d_pad - d)))
    yp = jnp.pad(y, ((0, m_pad - m), (0, d_pad - d)))

    act_spec = pl.BlockSpec((tm, d_pad), lambda i: (i, 0))
    wcat_spec = pl.BlockSpec((d_pad, 3 * d_pad), lambda i: (0, 0))
    ucat_spec = pl.BlockSpec((d_pad, 2 * d_pad), lambda i: (0, 0))
    ug_spec = pl.BlockSpec((d_pad, d_pad), lambda i: (0, 0))
    bg_spec = pl.BlockSpec((1, d_pad), lambda i: (0, 0))

    cost = pl.CostEstimate(
        flops=12 * m_pad * d_pad * d_pad,
        transcendentals=3 * m_pad * d_pad,
        bytes_accessed=(3 * m_pad * d_pad + 6 * d_pad * d_pad + d_pad) * itemsize,
    )

    out = pl.pallas_call(
        gru_gate_kernel,
        out_shape=jax.ShapeDtypeStruct((m_pad, d_pad), x.dtype),
        grid=(m_pad // tm,),
        in_specs=[act_spec, act_spec, wcat_spec, ucat_spec, ug_spec, bg_spec],
        out_specs=act_spec,
        compiler_params=pltpu.CompilerParams(
            dimension_semantics=("parallel",),
            vmem_limit_bytes=64 * 1024 * 1024,
        ),
        cost_estimate=cost,
    )(xp, yp, fused["Wcat"], fused["Ucat"], fused["Ug"], fused["bg"])

    return out[:m, :d]


def xavier_uniform(key, fan_in, fan_out, dtype=jnp.float32):
    # matches torch.nn.init.xavier_uniform_ for an [out, in] Linear weight
    limit = math.sqrt(6.0 / (fan_in + fan_out))
    return jax.random.uniform(key, (fan_out, fan_in), dtype,
                              minval=-limit, maxval=limit)


def init_params(key, input_dim, bg=0.0):
    keys = jax.random.split(key, 6)
    names = ["Wr", "Ur", "Wz", "Uz", "Wg", "Ug"]
    params = {}
    for name, k in zip(names, keys):
        w = xavier_uniform(k, input_dim, input_dim)      # [out, in] like torch
        params[name] = w.T                               # pre-transpose -> [in, out]
    params["bg"] = jnp.full((1, input_dim), bg, dtype=jnp.float32)
    return params


def gru_gate_ref(x, y, params):
    # plain-JAX reference for sanity checking
    mm = lambda a, w: a @ w
    r = jax.nn.sigmoid(mm(y, params["Wr"]) + mm(x, params["Ur"]))
    z = jax.nn.sigmoid(mm(y, params["Wz"]) + mm(x, params["Uz"]) - params["bg"])
    h = jnp.tanh(mm(y, params["Wg"]) + mm(r * x, params["Ug"]))
    return (1.0 - z) * x + z * h


if __name__ == "__main__":
    key = jax.random.PRNGKey(0)
    k_param, k_x, k_y = jax.random.split(key, 3)

    seq, batch, input_dim = 8, 2, 32          # small GTrXL-like shapes
    M = seq * batch                            # flattened leading dims

    params = init_params(k_param, input_dim, bg=0.0)
    fused = fuse_params(params)                # fuse/pad once, reuse across calls

    x = jax.random.normal(k_x, (M, input_dim), dtype=jnp.float32)
    y = jax.random.normal(k_y, (M, input_dim), dtype=jnp.float32)

    out = gru_gate(x, y, fused)
    out = jax.block_until_ready(out)

    ref = gru_gate_ref(x, y, params)
    assert out.shape == (M, input_dim)
    assert jnp.allclose(out, ref, atol=1e-5, rtol=1e-5), \
        float(jnp.max(jnp.abs(out - ref)))

    print("KERNEL_OK")
</pallas_src>

<mosaic_0001>
module attributes {stable_mosaic.version = 11 : i64} {
  func.func @gru_gate_kernel(%arg0: i32, %arg1: memref<16x128xf32, #tpu.memory_space<vmem>>, %arg2: memref<16x128xf32, #tpu.memory_space<vmem>>, %arg3: memref<128x384xf32, #tpu.memory_space<vmem>>, %arg4: memref<128x256xf32, #tpu.memory_space<vmem>>, %arg5: memref<128x128xf32, #tpu.memory_space<vmem>>, %arg6: memref<1x128xf32, #tpu.memory_space<vmem>>, %arg7: memref<16x128xf32, #tpu.memory_space<vmem>>) attributes {dimension_semantics = [#tpu.dimension_semantics<parallel>], iteration_bounds = array<i64: 1>, scalar_prefetch = 0 : i64, scratch_operands = 0 : i64, tpu.core_type = #tpu.core_type<tc>, window_params = [{transform_indices = @transform_0, window_bounds = array<i64: 16, 128>}, {transform_indices = @transform_1, window_bounds = array<i64: 16, 128>}, {pipeline_mode = #tpu.pipeline_mode<synchronous>, transform_indices = @transform_2, window_bounds = array<i64: 128, 384>}, {pipeline_mode = #tpu.pipeline_mode<synchronous>, transform_indices = @transform_3, window_bounds = array<i64: 128, 256>}, {pipeline_mode = #tpu.pipeline_mode<synchronous>, transform_indices = @transform_4, window_bounds = array<i64: 128, 128>}, {pipeline_mode = #tpu.pipeline_mode<synchronous>, transform_indices = @transform_5, window_bounds = array<i64: 1, 128>}, {transform_indices = @transform_6, window_bounds = array<i64: 16, 128>}]} {
    %c0 = arith.constant 0 : index
    %c0_0 = arith.constant 0 : index
    %0 = vector.load %arg1[%c0, %c0_0] : memref<16x128xf32, #tpu.memory_space<vmem>>, vector<16x128xf32>
    %c0_1 = arith.constant 0 : index
    %c0_2 = arith.constant 0 : index
    %1 = vector.load %arg2[%c0_1, %c0_2] : memref<16x128xf32, #tpu.memory_space<vmem>>, vector<16x128xf32>
    %c0_3 = arith.constant 0 : index
    %c0_4 = arith.constant 0 : index
    %2 = vector.load %arg3[%c0_3, %c0_4] : memref<128x384xf32, #tpu.memory_space<vmem>>, vector<128x384xf32>
    %cst = arith.constant dense<0.000000e+00> : vector<16x384xf32>
    %3 = tpu.matmul %1, %2, %cst {dimension_numbers = #tpu.dot_dimension_numbers<[1], [0], [0], [1], [0, 0, 1, 1], [], []>} : vector<16x128xf32>, vector<128x384xf32>, vector<16x384xf32> -> vector<16x384xf32>
    %c0_5 = arith.constant 0 : index
    %c0_6 = arith.constant 0 : index
    %4 = vector.load %arg4[%c0_5, %c0_6] : memref<128x256xf32, #tpu.memory_space<vmem>>, vector<128x256xf32>
    %cst_7 = arith.constant dense<0.000000e+00> : vector<16x256xf32>
    %5 = tpu.matmul %0, %4, %cst_7 {dimension_numbers = #tpu.dot_dimension_numbers<[1], [0], [0], [1], [0, 0, 1, 1], [], []>} : vector<16x128xf32>, vector<128x256xf32>, vector<16x256xf32> -> vector<16x256xf32>
    %c0_8 = arith.constant 0 : index
    %c0_9 = arith.constant 0 : index
    %6 = vector.load %arg6[%c0_8, %c0_9] : memref<1x128xf32, #tpu.memory_space<vmem>>, vector<1x128xf32>
    %7 = vector.extract_strided_slice %3 {offsets = [0, 0], sizes = [16, 128], strides = [1, 1]} : vector<16x384xf32> to vector<16x128xf32>
    %8 = vector.extract_strided_slice %5 {offsets = [0, 0], sizes = [16, 128], strides = [1, 1]} : vector<16x256xf32> to vector<16x128xf32>
    %9 = arith.addf %7, %8 : vector<16x128xf32>
    %10 = arith.negf %9 : vector<16x128xf32>
    %11 = math.exp %10 : vector<16x128xf32>
    %cst_10 = arith.constant 1.000000e+00 : f32
    %12 = vector.broadcast %cst_10 : f32 to vector<16x128xf32>
    %13 = arith.addf %12, %11 : vector<16x128xf32>
    %14 = arith.divf %12, %13 : vector<16x128xf32>
    %15 = vector.extract_strided_slice %3 {offsets = [0, 128], sizes = [16, 128], strides = [1, 1]} : vector<16x384xf32> to vector<16x128xf32>
    %16 = vector.extract_strided_slice %5 {offsets = [0, 128], sizes = [16, 128], strides = [1, 1]} : vector<16x256xf32> to vector<16x128xf32>
    %17 = arith.addf %15, %16 : vector<16x128xf32>
    %18 = vector.broadcast %6 : vector<1x128xf32> to vector<16x128xf32>
    %19 = arith.subf %17, %18 : vector<16x128xf32>
    %20 = arith.negf %19 : vector<16x128xf32>
    %21 = math.exp %20 : vector<16x128xf32>
    %cst_11 = arith.constant 1.000000e+00 : f32
    %22 = vector.broadcast %cst_11 : f32 to vector<16x128xf32>
    %23 = arith.addf %22, %21 : vector<16x128xf32>
    %24 = arith.divf %22, %23 : vector<16x128xf32>
    %25 = arith.mulf %14, %0 : vector<16x128xf32>
    %26 = vector.extract_strided_slice %3 {offsets = [0, 256], sizes = [16, 128], strides = [1, 1]} : vector<16x384xf32> to vector<16x128xf32>
    %c0_12 = arith.constant 0 : index
    %c0_13 = arith.constant 0 : index
    %27 = vector.load %arg5[%c0_12, %c0_13] : memref<128x128xf32, #tpu.memory_space<vmem>>, vector<128x128xf32>
    %cst_14 = arith.constant dense<0.000000e+00> : vector<16x128xf32>
    %28 = tpu.matmul %25, %27, %cst_14 {dimension_numbers = #tpu.dot_dimension_numbers<[1], [0], [0], [1], [0, 0, 1, 1], [], []>} : vector<16x128xf32>, vector<128x128xf32>, vector<16x128xf32> -> vector<16x128xf32>
    %29 = arith.addf %26, %28 : vector<16x128xf32>
    %30 = math.tanh %29 : vector<16x128xf32>
    %cst_15 = arith.constant 1.000000e+00 : f32
    %31 = vector.broadcast %cst_15 : f32 to vector<16x128xf32>
    %32 = arith.subf %31, %24 : vector<16x128xf32>
    %33 = arith.mulf %32, %0 : vector<16x128xf32>
    %34 = arith.mulf %24, %30 : vector<16x128xf32>
    %35 = arith.addf %33, %34 : vector<16x128xf32>
    %c0_16 = arith.constant 0 : index
    %c0_17 = arith.constant 0 : index
    %36 = vector.load %arg7[%c0_16, %c0_17] : memref<16x128xf32, #tpu.memory_space<vmem>>, vector<16x128xf32>
    tpu.vector_store %arg7[%c0_16, %c0_17], %35 {strides = array<i32>} : memref<16x128xf32, #tpu.memory_space<vmem>>, vector<16x128xf32>,
    return
  }
  func.func @transform_0(%arg0: i32) -> (i32, i32) {
    %c0_i32 = arith.constant 0 : i32
    %c0_i32_0 = arith.constant 0 : i32
    return %arg0, %c0_i32 : i32, i32
  }
  func.func @transform_1(%arg0: i32) -> (i32, i32) {
    %c0_i32 = arith.constant 0 : i32
    %c0_i32_0 = arith.constant 0 : i32
    return %arg0, %c0_i32 : i32, i32
  }
  func.func @transform_2(%arg0: i32) -> (i32, i32) {
    %c0_i32 = arith.constant 0 : i32
    %c0_i32_0 = arith.constant 0 : i32
    %c0_i32_1 = arith.constant 0 : i32
    return %c0_i32, %c0_i32_0 : i32, i32
  }
  func.func @transform_3(%arg0: i32) -> (i32, i32) {
    %c0_i32 = arith.constant 0 : i32
    %c0_i32_0 = arith.constant 0 : i32
    %c0_i32_1 = arith.constant 0 : i32
    return %c0_i32, %c0_i32_0 : i32, i32
  }
  func.func @transform_4(%arg0: i32) -> (i32, i32) {
    %c0_i32 = arith.constant 0 : i32
    %c0_i32_0 = arith.constant 0 : i32
    %c0_i32_1 = arith.constant 0 : i32
    return %c0_i32, %c0_i32_0 : i32, i32
  }
  func.func @transform_5(%arg0: i32) -> (i32, i32) {
    %c0_i32 = arith.constant 0 : i32
    %c0_i32_0 = arith.constant 0 : i32
    %c0_i32_1 = arith.constant 0 : i32
    return %c0_i32, %c0_i32_0 : i32, i32
  }
  func.func @transform_6(%arg0: i32) -> (i32, i32) {
    %c0_i32 = arith.constant 0 : i32
    %c0_i32_0 = arith.constant 0 : i32
    return %arg0, %c0_i32 : i32, i32
  }
}

</mosaic_0001>

<llo_original>
// kernel: gru_gate.1
$region0: #{gru_gate.1}
  #allocation0 [shape = 'u32[]', space=smem, size = 0x4, offset = 0x4, fixed_abs, tag = 'smem constant byte address 0x4 - core index']
  #allocation1 [shape = 'u32[144,128]{1,0:T(1,128)}', space=vmem, size = 0x12000, scoped, tag = 'internal scratch']
  %s0 = inlined_call_operand.vmem [shape: f32[16,128], index: 0, kind: input, shape index: {}]
  %s1 = inlined_call_operand.vmem [shape: f32[16,128], index: 1, kind: input, shape index: {}]
  %s2 = inlined_call_operand.hbm [shape: f32[128,384], index: 2, kind: input, shape index: {}]
  %s3 = inlined_call_operand.hbm [shape: f32[128,256], index: 3, kind: input, shape index: {}]
  %s4 = inlined_call_operand.hbm [shape: f32[128,128], index: 4, kind: input, shape index: {}]
  %s5 = inlined_call_operand.vmem [shape: f32[1,128], index: 5, kind: input, shape index: {}]
  %s6 = inlined_call_operand.hbm [shape: f32[16,128], index: 6, kind: output, shape index: {}]
  %s7 = sld [smem:[#allocation0]]
  $region46: #{gru_gate.1} parent=0
    _
  %s9 = ssub.s32 1, %s7
  %s10 = scalar_select 0, %s9, %s7
  $region1: #{gru_gate.1} parent=0
    #allocation2 [shape = 'u8[196608]{0}', space=vmem, size = 0x30000, scoped, tag = 'input window, operand 2, single buffered']
    #allocation3 [shape = 's32[1]{0}', space=sflag, size = 0x4, scoped, tag = 'scoped memory for gru_gate.1']
    #allocation4 [shape = 's32[1]{0}', space=sflag, size = 0x4, scoped, tag = 'scoped memory for gru_gate.1']
    #allocation5 [shape = 'u8[131072]{0}', space=vmem, size = 0x20000, scoped, tag = 'input window, operand 3, single buffered']
    #allocation6 [shape = 's32[1]{0}', space=sflag, size = 0x4, scoped, tag = 'scoped memory for gru_gate.1']
    #allocation7 [shape = 'u8[65536]{0}', space=vmem, size = 0x10000, scoped, tag = 'input window, operand 4, single buffered']
    #allocation8 [shape = 'u8[8192]{0}', space=vmem, size = 0x2000, scoped, tag = 'output window, operand 0, single buffered']
    %11 = vsyncpa [#allocation3], 0
    %12 = vsyncpa [#allocation6], 0
    %13 = vsyncpa [#allocation4], 0
    // Predicated region
    $region2: #{gru_gate.1} parent=1 // pred_check
      _
    $region3: #{gru_gate.1} parent=1 // pred_check_branch
      %15 = sbr.rel (0) target = $region5
    $region4: #{gru_gate.1} parent=1 // pred_region
      _
    $region5: #{gru_gate.1} parent=1 // pred_fallthru
      _
    // Predicated region
    $region6: #{gru_gate.1} parent=1 // pred_check
      _
    $region7: #{gru_gate.1} parent=1 // pred_check_branch
      %17 = sbr.rel (0) target = $region9
    $region8: #{gru_gate.1} parent=1 // pred_region
      _
    $region9: #{gru_gate.1} parent=1 // pred_fallthru
      _
    // Predicated region
    $region10: #{gru_gate.1} parent=1 // pred_check
      _
    $region11: #{gru_gate.1} parent=1 // pred_check_branch
      %19 = sbr.rel (0) target = $region13
    $region12: #{gru_gate.1} parent=1 // pred_region
      %s21 = ssub.s32 6144, 6144
      %22 = vsyncadd [#allocation3], %s21
      %s23 = sshll.u32 [#allocation2], 4
      %s24 = int_to_ptr.vmem [resolvable:$true] %s23
      %29 = dma.hbm_to_vmem [thread:$0]  %s2, 6144, %s24, [#allocation3], 384, 384, 24
    $region13: #{gru_gate.1} parent=1 // pred_fallthru
      _
    // Predicated region
    $region14: #{gru_gate.1} parent=1 // pred_check
      _
    $region15: #{gru_gate.1} parent=1 // pred_check_branch
      %31 = sbr.rel (0) target = $region17
    $region16: #{gru_gate.1} parent=1 // pred_region
      %s33 = ssub.s32 4096, 4096
      %34 = vsyncadd [#allocation6], %s33
      %s35 = sshll.u32 [#allocation5], 4
      %s36 = int_to_ptr.vmem [resolvable:$true] %s35
      %41 = dma.hbm_to_vmem [thread:$0]  %s3, 4096, %s36, [#allocation6], 256, 256, 16
    $region17: #{gru_gate.1} parent=1 // pred_fallthru
      _
    // Predicated region
    $region18: #{gru_gate.1} parent=1 // pred_check
      _
    $region19: #{gru_gate.1} parent=1 // pred_check_branch
      %43 = sbr.rel (0) target = $region21
    $region20: #{gru_gate.1} parent=1 // pred_region
      %s45 = ssub.s32 2048, 2048
      %46 = vsyncadd [#allocation6], %s45
      %s47 = sshll.u32 [#allocation7], 4
      %s48 = int_to_ptr.vmem [resolvable:$true] %s47
      %53 = dma.hbm_to_vmem [thread:$0]  %s4, 2048, %s48, [#allocation6], 128, 128, 8
    $region21: #{gru_gate.1} parent=1 // pred_fallthru
      _
    // Predicated region
    $region22: #{gru_gate.1} parent=1 // pred_check
      _
    $region23: #{gru_gate.1} parent=1 // pred_check_branch
      %55 = sbr.rel (0) target = $region25
    $region24: #{gru_gate.1} parent=1 // pred_region
      _
    $region25: #{gru_gate.1} parent=1 // pred_fallthru
      _
    // Predicated region
    $region26: #{gru_gate.1} parent=1 // pred_check
      _
    $region27: #{gru_gate.1} parent=1 // pred_check_branch
      %57 = sbr.rel (0) target = $region29
    $region28: #{gru_gate.1} parent=1 // pred_region
      %58 = dma.done [#allocation3], 6144
    $region29: #{gru_gate.1} parent=1 // pred_fallthru
      _
    // Predicated region
    $region30: #{gru_gate.1} parent=1 // pred_check
      _
    $region31: #{gru_gate.1} parent=1 // pred_check_branch
      %60 = sbr.rel (0) target = $region33
    $region32: #{gru_gate.1} parent=1 // pred_region
      %61 = dma.done [#allocation6], 4096
    $region33: #{gru_gate.1} parent=1 // pred_fallthru
      _
    // Predicated region
    $region34: #{gru_gate.1} parent=1 // pred_check
      _
    $region35: #{gru_gate.1} parent=1 // pred_check_branch
      %63 = sbr.rel (0) target = $region37
    $region36: #{gru_gate.1} parent=1 // pred_region
      %64 = dma.done [#allocation6], 2048
    $region37: #{gru_gate.1} parent=1 // pred_fallthru
      _
    %v65 = vld [vmem:[%s0] sm:$0xff]
    %v66 = vld [vmem:[%s0 + $0x8] sm:$0xff]
    %v67 = vld [vmem:[%s1] sm:$0xff]
    %v68 = vld [vmem:[%s1 + $0x8] sm:$0xff]
    %v69 = vld [vmem:[#allocation2] sm:$0xff]
    %v70 = vld [vmem:[#allocation2 + $0x8] sm:$0xff]
    %v71 = vld [vmem:[#allocation2 + $0x10] sm:$0xff]
    %v72 = vld [vmem:[#allocation2 + $0x18] sm:$0xff]
    %v73 = vld [vmem:[#allocation2 + $0x20] sm:$0xff]
    %v74 = vld [vmem:[#allocation2 + $0x28] sm:$0xff]
    %v75 = vld [vmem:[#allocation2 + $0x30] sm:$0xff]
    %v76 = vld [vmem:[#allocation2 + $0x38] sm:$0xff]
    %v77 = vld [vmem:[#allocation2 + $0x40] sm:$0xff]
    %v78 = vld [vmem:[#allocation2 + $0x48] sm:$0xff]
    %v79 = vld [vmem:[#allocation2 + $0x50] sm:$0xff]
    %v80 = vld [vmem:[#allocation2 + $0x58] sm:$0xff]
    %v81 = vld [vmem:[#allocation2 + $0x60] sm:$0xff]
    %v82 = vld [vmem:[#allocation2 + $0x68] sm:$0xff]
    %v83 = vld [vmem:[#allocation2 + $0x70] sm:$0xff]
    %v84 = vld [vmem:[#allocation2 + $0x78] sm:$0xff]
    %v85 = vld [vmem:[#allocation2 + $0x80] sm:$0xff]
    %v86 = vld [vmem:[#allocation2 + $0x88] sm:$0xff]
    %v87 = vld [vmem:[#allocation2 + $0x90] sm:$0xff]
    %v88 = vld [vmem:[#allocation2 + $0x98] sm:$0xff]
    %v89 = vld [vmem:[#allocation2 + $0xa0] sm:$0xff]
    %v90 = vld [vmem:[#allocation2 + $0xa8] sm:$0xff]
    %v91 = vld [vmem:[#allocation2 + $0xb0] sm:$0xff]
    %v92 = vld [vmem:[#allocation2 + $0xb8] sm:$0xff]
    %v93 = vld [vmem:[#allocation2 + $0xc0] sm:$0xff]
    %v94 = vld [vmem:[#allocation2 + $0xc8] sm:$0xff]
    %v95 = vld [vmem:[#allocation2 + $0xd0] sm:$0xff]
    %v96 = vld [vmem:[#allocation2 + $0xd8] sm:$0xff]
    %v97 = vld [vmem:[#allocation2 + $0xe0] sm:$0xff]
    %v98 = vld [vmem:[#allocation2 + $0xe8] sm:$0xff]
    %v99 = vld [vmem:[#allocation2 + $0xf0] sm:$0xff]
    %v100 = vld [vmem:[#allocation2 + $0xf8] sm:$0xff]
    %v101 = vld [vmem:[#allocation2 + $0x100] sm:$0xff]
    %v102 = vld [vmem:[#allocation2 + $0x108] sm:$0xff]
    %v103 = vld [vmem:[#allocation2 + $0x110] sm:$0xff]
    %v104 = vld [vmem:[#allocation2 + $0x118] sm:$0xff]
    %v105 = vld [vmem:[#allocation2 + $0x120] sm:$0xff]
    %v106 = vld [vmem:[#allocation2 + $0x128] sm:$0xff]
    %v107 = vld [vmem:[#allocation2 + $0x130] sm:$0xff]
    %v108 = vld [vmem:[#allocation2 + $0x138] sm:$0xff]
    %v109 = vld [vmem:[#allocation2 + $0x140] sm:$0xff]
    %v110 = vld [vmem:[#allocation2 + $0x148] sm:$0xff]
    %v111 = vld [vmem:[#allocation2 + $0x150] sm:$0xff]
    %v112 = vld [vmem:[#allocation2 + $0x158] sm:$0xff]
    %v113 = vld [vmem:[#allocation2 + $0x160] sm:$0xff]
    %v114 = vld [vmem:[#allocation2 + $0x168] sm:$0xff]
    %v115 = vld [vmem:[#allocation2 + $0x170] sm:$0xff]
    %v116 = vld [vmem:[#allocation2 + $0x178] sm:$0xff]
    %117 = vmatprep.subr.mxu0 %v115
    %118 = vmatpush1.msra.mxu0 %v114
    %119 = vmatprep.subr.mxu0 %v112
    %120 = vmatpush1.msra.mxu0 %v111
    %121 = vmatprep.subr.mxu0 %v109
    %122 = vmatpush1.msra.mxu0 %v108
    %123 = vmatprep.subr.mxu0 %v106
    %124 = vmatpush1.msra.mxu0 %v105
    %125 = vmatprep.subr.mxu0 %v103
    %126 = vmatpush1.msra.mxu0 %v102
    %127 = vmatprep.subr.mxu0 %v100
    %128 = vmatpush1.msra.mxu0 %v99
    %129 = vmatprep.subr.mxu0 %v97
    %130 = vmatpush1.msra.mxu0 %v96
    %131 = vmatprep.subr.mxu0 %v94
    %132 = vmatpush1.msra.mxu0 %v93
    %133 = vmatprep.subr.mxu0 %v91
    %134 = vmatpush1.msra.mxu0 %v90
    %135 = vmatprep.subr.mxu0 %v88
    %136 = vmatpush1.msra.mxu0 %v87
    %137 = vmatprep.subr.mxu0 %v85
    %138 = vmatpush1.msra.mxu0 %v84
    %139 = vmatprep.subr.mxu0 %v82
    %140 = vmatpush1.msra.mxu0 %v81
    %141 = vmatprep.subr.mxu0 %v79
    %142 = vmatpush1.msra.mxu0 %v78
    %143 = vmatprep.subr.mxu0 %v76
    %144 = vmatpush1.msra.mxu0 %v75
    %145 = vmatprep.subr.mxu0 %v73
    %146 = vmatpush1.msra.mxu0 %v72
    %147 = vmatprep.subr.mxu0 %v70
    %148 = vmatpush1.msra.mxu0 %v69
    %149 = vmatprep.subr.mxu0 0.0
    %150 = vmatpush2.msra.mxu0 0.0
    %151 = vmatprep.subr.mxu0 0.0
    %152 = vmatpush2.msra.mxu0 0.0
    %153 = vmatprep.subr.mxu0 0.0
    %154 = vmatpush2.msra.mxu0 0.0
    %155 = vmatprep.subr.mxu0 0.0
    %156 = vmatpush2.msra.mxu0 0.0
    %157 = vmatprep.subr.mxu0 0.0
    %158 = vmatpush2.msra.mxu0 0.0
    %159 = vmatprep.subr.mxu0 0.0
    %160 = vmatpush2.msra.mxu0 0.0
    %161 = vmatprep.subr.mxu0 0.0
    %162 = vmatpush2.msra.mxu0 0.0
    %163 = vmatprep.subr.mxu0 0.0
    %164 = vmatpush2.msra.mxu0 0.0
    %165 = vmatprep.subr.mxu0 0.0
    %166 = vmatpush2.msra.mxu0 0.0
    %167 = vmatprep.subr.mxu0 0.0
    %168 = vmatpush2.msra.mxu0 0.0
    %169 = vmatprep.subr.mxu0 0.0
    %170 = vmatpush2.msra.mxu0 0.0
    %171 = vmatprep.subr.mxu0 0.0
    %172 = vmatpush2.msra.mxu0 0.0
    %173 = vmatprep.subr.mxu0 0.0
    %174 = vmatpush2.msra.mxu0 0.0
    %175 = vmatprep.subr.mxu0 0.0
    %176 = vmatpush2.msra.mxu0 0.0
    %177 = vmatprep.subr.mxu0 0.0
    %178 = vmatpush2.msra.mxu0 0.0
    %179 = vmatprep.subr.mxu0 0.0
    %180 = vmatpush2.msra.mxu0 0.0
    %181 = vmatprep.mubr.f32.mxu0 0.0
    %182 = vmatmul.mubr.f32.gmra.mxu0 %v67
    %v183 = vpop.f32.mrf.mxu0
    %v184 = vadd.f32 0.0, %v183
    %v185 = vpop.f32.mrf.mxu0
    %v186 = vadd.f32 0.0, %v185
    %187 = vmatprep.mubr.f32.mxu0 0.0
    %188 = vmatmul.mubr.f32.gmra.mxu0 %v68
    %v189 = vpop.f32.mrf.mxu0
    %v190 = vadd.f32 0.0, %v189
    %v191 = vpop.f32.mrf.mxu0
    %v192 = vadd.f32 0.0, %v191
    %193 = vdwg.mxu0
    %194 = vmatprep.subr.mxu0 0.0
    %195 = vmatpush1.msra.mxu0 %v116
    %196 = vmatprep.subr.mxu0 0.0
    %197 = vmatpush1.msra.mxu0 %v113
    %198 = vmatprep.subr.mxu0 0.0
    %199 = vmatpush1.msra.mxu0 %v110
    %200 = vmatprep.subr.mxu0 0.0
    %201 = vmatpush1.msra.mxu0 %v107
    %202 = vmatprep.subr.mxu0 0.0
    %203 = vmatpush1.msra.mxu0 %v104
    %204 = vmatprep.subr.mxu0 0.0
    %205 = vmatpush1.msra.mxu0 %v101
    %206 = vmatprep.subr.mxu0 0.0
    %207 = vmatpush1.msra.mxu0 %v98
    %208 = vmatprep.subr.mxu0 0.0
    %209 = vmatpush1.msra.mxu0 %v95
    %210 = vmatprep.subr.mxu0 0.0
    %211 = vmatpush1.msra.mxu0 %v92
    %212 = vmatprep.subr.mxu0 0.0
    %213 = vmatpush1.msra.mxu0 %v89
    %214 = vmatprep.subr.mxu0 0.0
    %215 = vmatpush1.msra.mxu0 %v86
    %216 = vmatprep.subr.mxu0 0.0
    %217 = vmatpush1.msra.mxu0 %v83
    %218 = vmatprep.subr.mxu0 0.0
    %219 = vmatpush1.msra.mxu0 %v80
    %220 = vmatprep.subr.mxu0 0.0
    %221 = vmatpush1.msra.mxu0 %v77
    %222 = vmatprep.subr.mxu0 0.0
    %223 = vmatpush1.msra.mxu0 %v74
    %224 = vmatprep.subr.mxu0 0.0
    %225 = vmatpush1.msra.mxu0 %v71
    %226 = vmatprep.subr.mxu0 0.0
    %227 = vmatpush2.msra.mxu0 0.0
    %228 = vmatprep.subr.mxu0 0.0
    %229 = vmatpush2.msra.mxu0 0.0
    %230 = vmatprep.subr.mxu0 0.0
    %231 = vmatpush2.msra.mxu0 0.0
    %232 = vmatprep.subr.mxu0 0.0
    %233 = vmatpush2.msra.mxu0 0.0
    %234 = vmatprep.subr.mxu0 0.0
    %235 = vmatpush2.msra.mxu0 0.0
    %236 = vmatprep.subr.mxu0 0.0
    %237 = vmatpush2.msra.mxu0 0.0
    %238 = vmatprep.subr.mxu0 0.0
    %239 = vmatpush2.msra.mxu0 0.0
    %240 = vmatprep.subr.mxu0 0.0
    %241 = vmatpush2.msra.mxu0 0.0
    %242 = vmatprep.subr.mxu0 0.0
    %243 = vmatpush2.msra.mxu0 0.0
    %244 = vmatprep.subr.mxu0 0.0
    %245 = vmatpush2.msra.mxu0 0.0
    %246 = vmatprep.subr.mxu0 0.0
    %247 = vmatpush2.msra.mxu0 0.0
    %248 = vmatprep.subr.mxu0 0.0
    %249 = vmatpush2.msra.mxu0 0.0
    %250 = vmatprep.subr.mxu0 0.0
    %251 = vmatpush2.msra.mxu0 0.0
    %252 = vmatprep.subr.mxu0 0.0
    %253 = vmatpush2.msra.mxu0 0.0
    %254 = vmatprep.subr.mxu0 0.0
    %255 = vmatpush2.msra.mxu0 0.0
    %256 = vmatprep.subr.mxu0 0.0
    %257 = vmatpush2.msra.mxu0 0.0
    %258 = vmatprep.mubr.f32.mxu0 0.0
    %259 = vmatmul.mubr.f32.gmra.mxu0 %v67
    %v260 = vpop.f32.mrf.mxu0
    %v261 = vadd.f32 0.0, %v260
    %v262 = vpop.f32.mrf.mxu0
    %263 = vmatprep.mubr.f32.mxu0 0.0
    %264 = vmatmul.mubr.f32.gmra.mxu0 %v68
    %v265 = vpop.f32.mrf.mxu0
    %v266 = vadd.f32 0.0, %v265
    %v267 = vpop.f32.mrf.mxu0
    %268 = vdwg.mxu0
    %v269 = vld [vmem:[#allocation5] sm:$0xff]
    %v270 = vld [vmem:[#allocation5 + $0x8] sm:$0xff]
    %v271 = vld [vmem:[#allocation5 + $0x10] sm:$0xff]
    %v272 = vld [vmem:[#allocation5 + $0x18] sm:$0xff]
    %v273 = vld [vmem:[#allocation5 + $0x20] sm:$0xff]
    %v274 = vld [vmem:[#allocation5 + $0x28] sm:$0xff]
    %v275 = vld [vmem:[#allocation5 + $0x30] sm:$0xff]
    %v276 = vld [vmem:[#allocation5 + $0x38] sm:$0xff]
    %v277 = vld [vmem:[#allocation5 + $0x40] sm:$0xff]
    %v278 = vld [vmem:[#allocation5 + $0x48] sm:$0xff]
    %v279 = vld [vmem:[#allocation5 + $0x50] sm:$0xff]
    %v280 = vld [vmem:[#allocation5 + $0x58] sm:$0xff]
    %v281 = vld [vmem:[#allocation5 + $0x60] sm:$0xff]
    %v282 = vld [vmem:[#allocation5 + $0x68] sm:$0xff]
    %v283 = vld [vmem:[#allocation5 + $0x70] sm:$0xff]
    %v284 = vld [vmem:[#allocation5 + $0x78] sm:$0xff]
    %v285 = vld [vmem:[#allocation5 + $0x80] sm:$0xff]
    %v286 = vld [vmem:[#allocation5 + $0x88] sm:$0xff]
    %v287 = vld [vmem:[#allocation5 + $0x90] sm:$0xff]
    %v288 = vld [vmem:[#allocation5 + $0x98] sm:$0xff]
    %v289 = vld [vmem:[#allocation5 + $0xa0] sm:$0xff]
    %v290 = vld [vmem:[#allocation5 + $0xa8] sm:$0xff]
    %v291 = vld [vmem:[#allocation5 + $0xb0] sm:$0xff]
    %v292 = vld [vmem:[#allocation5 + $0xb8] sm:$0xff]
    %v293 = vld [vmem:[#allocation5 + $0xc0] sm:$0xff]
    %v294 = vld [vmem:[#allocation5 + $0xc8] sm:$0xff]
    %v295 = vld [vmem:[#allocation5 + $0xd0] sm:$0xff]
    %v296 = vld [vmem:[#allocation5 + $0xd8] sm:$0xff]
    %v297 = vld [vmem:[#allocation5 + $0xe0] sm:$0xff]
    %v298 = vld [vmem:[#allocation5 + $0xe8] sm:$0xff]
    %v299 = vld [vmem:[#allocation5 + $0xf0] sm:$0xff]
    %v300 = vld [vmem:[#allocation5 + $0xf8] sm:$0xff]
    %301 = vmatprep.subr.mxu0 %v300
    %302 = vmatpush1.msra.mxu0 %v299
    %303 = vmatprep.subr.mxu0 %v298
    %304 = vmatpush1.msra.mxu0 %v297
    %305 = vmatprep.subr.mxu0 %v296
    %306 = vmatpush1.msra.mxu0 %v295
    %307 = vmatprep.subr.mxu0 %v294
    %308 = vmatpush1.msra.mxu0 %v293
    %309 = vmatprep.subr.mxu0 %v292
    %310 = vmatpush1.msra.mxu0 %v291
    %311 = vmatprep.subr.mxu0 %v290
    %312 = vmatpush1.msra.mxu0 %v289
    %313 = vmatprep.subr.mxu0 %v288
    %314 = vmatpush1.msra.mxu0 %v287
    %315 = vmatprep.subr.mxu0 %v286
    %316 = vmatpush1.msra.mxu0 %v285
    %317 = vmatprep.subr.mxu0 %v284
    %318 = vmatpush1.msra.mxu0 %v283
    %319 = vmatprep.subr.mxu0 %v282
    %320 = vmatpush1.msra.mxu0 %v281
    %321 = vmatprep.subr.mxu0 %v280
    %322 = vmatpush1.msra.mxu0 %v279
    %323 = vmatprep.subr.mxu0 %v278
    %324 = vmatpush1.msra.mxu0 %v277
    %325 = vmatprep.subr.mxu0 %v276
    %326 = vmatpush1.msra.mxu0 %v275
    %327 = vmatprep.subr.mxu0 %v274
    %328 = vmatpush1.msra.mxu0 %v273
    %329 = vmatprep.subr.mxu0 %v272
    %330 = vmatpush1.msra.mxu0 %v271
    %331 = vmatprep.subr.mxu0 %v270
    %332 = vmatpush1.msra.mxu0 %v269
    %333 = vmatprep.subr.mxu0 0.0
    %334 = vmatpush2.msra.mxu0 0.0
    %335 = vmatprep.subr.mxu0 0.0
    %336 = vmatpush2.msra.mxu0 0.0
    %337 = vmatprep.subr.mxu0 0.0
    %338 = vmatpush2.msra.mxu0 0.0
    %339 = vmatprep.subr.mxu0 0.0
    %340 = vmatpush2.msra.mxu0 0.0
    %341 = vmatprep.subr.mxu0 0.0
    %342 = vmatpush2.msra.mxu0 0.0
    %343 = vmatprep.subr.mxu0 0.0
    %344 = vmatpush2.msra.mxu0 0.0
    %345 = vmatprep.subr.mxu0 0.0
    %346 = vmatpush2.msra.mxu0 0.0
    %347 = vmatprep.subr.mxu0 0.0
    %348 = vmatpush2.msra.mxu0 0.0
    %349 = vmatprep.subr.mxu0 0.0
    %350 = vmatpush2.msra.mxu0 0.0
    %351 = vmatprep.subr.mxu0 0.0
    %352 = vmatpush2.msra.mxu0 0.0
    %353 = vmatprep.subr.mxu0 0.0
    %354 = vmatpush2.msra.mxu0 0.0
    %355 = vmatprep.subr.mxu0 0.0
    %356 = vmatpush2.msra.mxu0 0.0
    %357 = vmatprep.subr.mxu0 0.0
    %358 = vmatpush2.msra.mxu0 0.0
    %359 = vmatprep.subr.mxu0 0.0
    %360 = vmatpush2.msra.mxu0 0.0
    %361 = vmatprep.subr.mxu0 0.0
    %362 = vmatpush2.msra.mxu0 0.0
    %363 = vmatprep.subr.mxu0 0.0
    %364 = vmatpush2.msra.mxu0 0.0
    %365 = vmatprep.mubr.f32.mxu0 0.0
    %366 = vmatmul.mubr.f32.gmra.mxu0 %v65
    %v367 = vpop.f32.mrf.mxu0
    %v368 = vadd.f32 0.0, %v367
    %v369 = vpop.f32.mrf.mxu0
    %v370 = vadd.f32 0.0, %v369
    %371 = vmatprep.mubr.f32.mxu0 0.0
    %372 = vmatmul.mubr.f32.gmra.mxu0 %v66
    %v373 = vpop.f32.mrf.mxu0
    %v374 = vadd.f32 0.0, %v373
    %v375 = vpop.f32.mrf.mxu0
    %v376 = vadd.f32 0.0, %v375
    %377 = vdwg.mxu0
    %v378 = vld [vmem:[%s5] sm:$0x1]
    %v379 = vadd.f32 %v184, %v368
    %v380 = vadd.f32 %v190, %v374
    %v381 = vxor.u32 %v379, 2147483648
    %v382 = vxor.u32 %v380, 2147483648
    %v383 = vmul.f32 %v381, 1.442695
    %v384 = vpow.pop %v383
    %v385 = vmul.f32 %v382, 1.442695
    %v386 = vpow.pop %v385
    %v387 = vadd.f32 %v384, 1.0
    %v388 = vadd.f32 %v386, 1.0
    %v389 = vrcp.pop %v387
    %v390 = vmul.f32 1.0, %v389
    %v391 = vrcp.pop %v388
    %v392 = vmul.f32 1.0, %v391
    %v393 = vadd.f32 %v186, %v370
    %v394 = vadd.f32 %v192, %v376
    %v396 = vlaneseq
    %v397 = vshrl.u32 %v396, 7
    %v398 = vsub.s32 0, %v397
    %v399 = vrot.slane %v378, %v398
    %v401 = vsub.f32 %v393, %v399
    %v402 = vsub.f32 %v394, %v399
    %v403 = vxor.u32 %v401, 2147483648
    %v404 = vxor.u32 %v402, 2147483648
    %v405 = vmul.f32 %v403, 1.442695
    %v406 = vpow.pop %v405
    %v407 = vmul.f32 %v404, 1.442695
    %v408 = vpow.pop %v407
    %v409 = vadd.f32 %v406, 1.0
    %v410 = vadd.f32 %v408, 1.0
    %v411 = vrcp.pop %v409
    %v412 = vmul.f32 1.0, %v411
    %v413 = vrcp.pop %v410
    %v414 = vmul.f32 1.0, %v413
    %v415 = vmul.f32 %v390, %v65
    %v416 = vmul.f32 %v392, %v66
    %v417 = vld [vmem:[#allocation7] sm:$0xff]
    %v418 = vld [vmem:[#allocation7 + $0x8] sm:$0xff]
    %v419 = vld [vmem:[#allocation7 + $0x10] sm:$0xff]
    %v420 = vld [vmem:[#allocation7 + $0x18] sm:$0xff]
    %v421 = vld [vmem:[#allocation7 + $0x20] sm:$0xff]
    %v422 = vld [vmem:[#allocation7 + $0x28] sm:$0xff]
    %v423 = vld [vmem:[#allocation7 + $0x30] sm:$0xff]
    %v424 = vld [vmem:[#allocation7 + $0x38] sm:$0xff]
    %v425 = vld [vmem:[#allocation7 + $0x40] sm:$0xff]
    %v426 = vld [vmem:[#allocation7 + $0x48] sm:$0xff]
    %v427 = vld [vmem:[#allocation7 + $0x50] sm:$0xff]
    %v428 = vld [vmem:[#allocation7 + $0x58] sm:$0xff]
    %v429 = vld [vmem:[#allocation7 + $0x60] sm:$0xff]
    %v430 = vld [vmem:[#allocation7 + $0x68] sm:$0xff]
    %v431 = vld [vmem:[#allocation7 + $0x70] sm:$0xff]
    %v432 = vld [vmem:[#allocation7 + $0x78] sm:$0xff]
    %433 = vmatprep.subr.mxu0 0.0
    %434 = vmatpush1.msra.mxu0 %v432
    %435 = vmatprep.subr.mxu0 0.0
    %436 = vmatpush1.msra.mxu0 %v431
    %437 = vmatprep.subr.mxu0 0.0
    %438 = vmatpush1.msra.mxu0 %v430
    %439 = vmatprep.subr.mxu0 0.0
    %440 = vmatpush1.msra.mxu0 %v429
    %441 = vmatprep.subr.mxu0 0.0
    %442 = vmatpush1.msra.mxu0 %v428
    %443 = vmatprep.subr.mxu0 0.0
    %444 = vmatpush1.msra.mxu0 %v427
    %445 = vmatprep.subr.mxu0 0.0
    %446 = vmatpush1.msra.mxu0 %v426
    %447 = vmatprep.subr.mxu0 0.0
    %448 = vmatpush1.msra.mxu0 %v425
    %449 = vmatprep.subr.mxu0 0.0
    %450 = vmatpush1.msra.mxu0 %v424
    %451 = vmatprep.subr.mxu0 0.0
    %452 = vmatpush1.msra.mxu0 %v423
    %453 = vmatprep.subr.mxu0 0.0
    %454 = vmatpush1.msra.mxu0 %v422
    %455 = vmatprep.subr.mxu0 0.0
    %456 = vmatpush1.msra.mxu0 %v421
    %457 = vmatprep.subr.mxu0 0.0
    %458 = vmatpush1.msra.mxu0 %v420
    %459 = vmatprep.subr.mxu0 0.0
    %460 = vmatpush1.msra.mxu0 %v419
    %461 = vmatprep.subr.mxu0 0.0
    %462 = vmatpush1.msra.mxu0 %v418
    %463 = vmatprep.subr.mxu0 0.0
    %464 = vmatpush1.msra.mxu0 %v417
    %465 = vmatprep.subr.mxu0 0.0
    %466 = vmatpush2.msra.mxu0 0.0
    %467 = vmatprep.subr.mxu0 0.0
    %468 = vmatpush2.msra.mxu0 0.0
    %469 = vmatprep.subr.mxu0 0.0
    %470 = vmatpush2.msra.mxu0 0.0
    %471 = vmatprep.subr.mxu0 0.0
    %472 = vmatpush2.msra.mxu0 0.0
    %473 = vmatprep.subr.mxu0 0.0
    %474 = vmatpush2.msra.mxu0 0.0
    %475 = vmatprep.subr.mxu0 0.0
    %476 = vmatpush2.msra.mxu0 0.0
    %477 = vmatprep.subr.mxu0 0.0
    %478 = vmatpush2.msra.mxu0 0.0
    %479 = vmatprep.subr.mxu0 0.0
    %480 = vmatpush2.msra.mxu0 0.0
    %481 = vmatprep.subr.mxu0 0.0
    %482 = vmatpush2.msra.mxu0 0.0
    %483 = vmatprep.subr.mxu0 0.0
    %484 = vmatpush2.msra.mxu0 0.0
    %485 = vmatprep.subr.mxu0 0.0
    %486 = vmatpush2.msra.mxu0 0.0
    %487 = vmatprep.subr.mxu0 0.0
    %488 = vmatpush2.msra.mxu0 0.0
    %489 = vmatprep.subr.mxu0 0.0
    %490 = vmatpush2.msra.mxu0 0.0
    %491 = vmatprep.subr.mxu0 0.0
    %492 = vmatpush2.msra.mxu0 0.0
    %493 = vmatprep.subr.mxu0 0.0
    %494 = vmatpush2.msra.mxu0 0.0
    %495 = vmatprep.subr.mxu0 0.0
    %496 = vmatpush2.msra.mxu0 0.0
    %497 = vmatprep.mubr.f32.mxu0 0.0
    %498 = vmatmul.mubr.f32.gmra.mxu0 %v415
    %v499 = vpop.f32.mrf.mxu0
    %v500 = vadd.f32 0.0, %v499
    %v501 = vpop.f32.mrf.mxu0
    %502 = vmatprep.mubr.f32.mxu0 0.0
    %503 = vmatmul.mubr.f32.gmra.mxu0 %v416
    %v504 = vpop.f32.mrf.mxu0
    %v505 = vadd.f32 0.0, %v504
    %v506 = vpop.f32.mrf.mxu0
    %507 = vdwg.mxu0
    %v508 = vadd.f32 %v261, %v500
    %v509 = vadd.f32 %v266, %v505
    %v510 = vtanh.pop %v508
    %v511 = vtanh.pop %v509
    %v512 = vsub.f32 1.0, %v412
    %v513 = vsub.f32 1.0, %v414
    %v514 = vmul.f32 %v512, %v65
    %v515 = vmul.f32 %v513, %v66
    %v516 = vmul.f32 %v412, %v510
    %v517 = vmul.f32 %v414, %v511
    %v518 = vadd.f32 %v514, %v516
    %v519 = vadd.f32 %v515, %v517
    %520 = vst [vmem:[#allocation8] sm:$0xff] %v518
    %521 = vst [vmem:[#allocation8 + $0x8] sm:$0xff] %v519
    // Predicated region
    $region38: #{gru_gate.1} parent=1 // pred_check
      _
    $region39: #{gru_gate.1} parent=1 // pred_check_branch
      %523 = sbr.rel (0) target = $region41
    $region40: #{gru_gate.1} parent=1 // pred_region
      %s525 = ssub.s32 256, 256
      %526 = vsyncadd [#allocation4], %s525
      %s527 = sshll.u32 [#allocation8], 4
      %s528 = int_to_ptr.vmem [resolvable:$true] %s527
      %533 = dma.vmem_to_hbm [thread:$0]  %s528, 256, %s6, [#allocation4], 128, 128, 8
    $region41: #{gru_gate.1} parent=1 // pred_fallthru
      _
    // Predicated region
    $region42: #{gru_gate.1} parent=1 // pred_check
      _
    $region43: #{gru_gate.1} parent=1 // pred_check_branch
      %535 = sbr.rel (0) target = $region45
    $region44: #{gru_gate.1} parent=1 // pred_region
      %536 = dma.done [#allocation4], 256
    $region45: #{gru_gate.1} parent=1 // pred_fallthru
      _
    %537 = vsyncpa [#allocation3], 1
    %538 = vsyncpa [#allocation6], 1
    %539 = vsyncpa [#allocation4], 1

</llo_original>
